<compile_context>
chip_gen: v7x
topology: tpu7x:2x2x1
jax: 0.10.0
libtpu: 0.0.40
codegen_flags: <defaults>
</compile_context>

<pallas_src>
import functools
import math

import jax
import jax.numpy as jnp
from jax.experimental import pallas as pl
from jax.experimental.pallas import tpu as pltpu


# ----------------------------------------------------------------------------
# Gaussian coefficients (deterministic, mirror GaussianSmoothing.__init__)
# ----------------------------------------------------------------------------
def _gaussian_1d(size, sigma):
    """Normalized 1-D Gaussian taps as plain Python floats (compile-time consts)."""
    mean = (size - 1) / 2.0
    vals = [math.exp(-0.5 * ((i - mean) / sigma) ** 2) for i in range(size)]
    s = sum(vals)
    return tuple(v / s for v in vals)


def make_gaussian_weight_2d(channels, kernel_size, sigma):
    """(C, K, K) 2-D kernel built exactly like the PyTorch module (reference only)."""
    if isinstance(kernel_size, (int, float)):
        kernel_size = [int(kernel_size)] * 2
    if isinstance(sigma, (int, float)):
        sigma = [float(sigma)] * 2
    grids = jnp.meshgrid(
        *[jnp.arange(s, dtype=jnp.float32) for s in kernel_size], indexing="ij"
    )
    k = jnp.ones((), dtype=jnp.float32)
    for size, std, g in zip(kernel_size, sigma, grids):
        mean = (size - 1) / 2.0
        k = k * (1.0 / (std * math.sqrt(2.0 * math.pi))) * jnp.exp(
            -(((g - mean) / std) ** 2) / 2.0
        )
    k = k / jnp.sum(k)
    return jnp.broadcast_to(k, (channels,) + k.shape).astype(jnp.float32)


# ----------------------------------------------------------------------------
# Pallas kernel
# ----------------------------------------------------------------------------
def _shift_lanes(x, d):
    """result[..., i] = x[..., i + d], zero-filled where i + d is out of range."""
    if d == 0:
        return x
    n = x.shape[-1]
    if abs(d) >= n:                       # degenerate (kernel taller than plane)
        return jnp.zeros_like(x)
    zeros = jnp.zeros(x.shape[:-1] + (abs(d),), x.dtype)
    if d > 0:
        return jnp.concatenate([x[..., d:], zeros], axis=-1)
    return jnp.concatenate([zeros, x[..., : n + d]], axis=-1)


def _gauss_kernel(x_ref, col_ref, o_ref, *, W, wh, ww):
    # x_ref:   (TB, H*W) block of flattened planes          (VMEM)
    # col_ref: (1, H*W)  int32 column index of every lane   (VMEM, resident)
    # o_ref:   (TB, H*W) output block                       (VMEM)
    x = x_ref[...].astype(jnp.float32)
    col = col_ref[...]                      # broadcasts over sublane (plane) rows
    ph = (len(wh) - 1) // 2                 # PyTorch 'same': low pad = (K-1)//2
    pw = (len(ww) - 1) // 2

    # --- vertical (H) pass: lane shifts by multiples of W ---------------------
    # Shifting the flattened lane axis by s*W moves row r -> r+s within a plane;
    # the zero fill of _shift_lanes is exactly the 'same' zero padding at the
    # top/bottom borders, columns never mix, so no mask is needed here.
    acc = wh[ph] * x
    for i, w in enumerate(wh):
        s = i - ph
        if s == 0:
            continue
        acc = acc + w * _shift_lanes(x, s * W)

    # --- horizontal (W) pass: lane shifts by s, masked at row borders ---------
    out = ww[pw] * acc
    for j, w in enumerate(ww):
        s = j - pw
        if s == 0:
            continue
        t = _shift_lanes(acc, s)
        if s > 0:
            valid = col < (W - s)           # col + s < W
        else:
            valid = col >= (-s)             # col + s >= 0
        out = out + w * jnp.where(valid, t, 0.0)

    o_ref[...] = out.astype(o_ref.dtype)


_TARGET_BLOCK_BYTES = 2 * 1024 * 1024  # ~2 MiB per input block: past the ~1 MiB knee
                                       # where per-step overhead is amortized, and the
                                       # f32 intermediates + double-buffered in/out
                                       # stay comfortably inside v7x's 64 MiB VMEM.


def _choose_plane_block(nc, plane_bytes):
    tb = max(1, _TARGET_BLOCK_BYTES // max(plane_bytes, 1))
    if tb >= nc:
        return nc                       # full axis: always a legal block shape
    tb = (max(tb, 8) // 8) * 8          # keep the sublane dim 8-aligned
    return nc if tb >= nc else tb
    # TODO(synk): planes so large that even 8 of them blow the VMEM budget would
    # need an H-tiled variant with halo rows; not needed for typical image sizes.


def gaussian_smoothing(x, kernel_size, sigma):
    """Equivalent to F.conv2d(x, gaussian_weight, groups=C, padding='same')."""
    if isinstance(kernel_size, (int, float)):
        kernel_size = (int(kernel_size),) * 2
    if isinstance(sigma, (int, float)):
        sigma = (float(sigma),) * 2
    wh = _gaussian_1d(kernel_size[0], sigma[0])   # normalized 1-D taps; their outer
    ww = _gaussian_1d(kernel_size[1], sigma[1])   # product == the module's 2-D kernel

    N, C, H, W = x.shape
    NC, HW = N * C, H * W

    # Free (contiguous) reshape -> lane-dense layout, no pre-pad HBM pass.
    x2 = x.reshape(NC, HW)
    col_ids = jnp.tile(jnp.arange(W, dtype=jnp.int32), H)[None, :]   # (1, HW)

    tb = _choose_plane_block(NC, HW * x.dtype.itemsize)
    grid = (pl.cdiv(NC, tb),)

    kernel = functools.partial(_gauss_kernel, W=W, wh=wh, ww=ww)
    out2 = pl.pallas_call(
        kernel,
        out_shape=jax.ShapeDtypeStruct((NC, HW), x.dtype),
        grid=grid,
        in_specs=[
            pl.BlockSpec((tb, HW), lambda p: (p, 0)),
            # Constant block index -> DMA'd once, stays VMEM-resident.
            pl.BlockSpec((1, HW), lambda p: (0, 0)),
        ],
        out_specs=pl.BlockSpec((tb, HW), lambda p: (p, 0)),
        compiler_params=pltpu.CompilerParams(
            dimension_semantics=("parallel",),        # megacore / v7x 2-TC sharding
            vmem_limit_bytes=48 * 1024 * 1024,        # > v5e's 16 MiB default scoped
        ),
    )(x2, col_ids)
    return out2.reshape(N, C, H, W)


if __name__ == "__main__":
    N, C, H, W = 2, 4, 16, 16
    kernel_size, sigma = 3, 1.0

    key = jax.random.PRNGKey(0)
    x = jax.random.normal(key, (N, C, H, W), dtype=jnp.float32)

    out = gaussian_smoothing(x, kernel_size, sigma)
    out = jax.block_until_ready(out)

    # Silent correctness check against XLA's grouped conv (same semantics as
    # F.conv2d(..., groups=C, padding='same')) with the module's 2-D kernel.
    weight = make_gaussian_weight_2d(C, kernel_size, sigma)          # (C, K, K)
    pad_lo = (kernel_size - 1) // 2
    pad_hi = (kernel_size - 1) - pad_lo
    ref = jax.lax.conv_general_dilated(
        x,
        weight[:, None, :, :],                                       # (C, 1, K, K)
        window_strides=(1, 1),
        padding=((pad_lo, pad_hi), (pad_lo, pad_hi)),
        feature_group_count=C,
        dimension_numbers=("NCHW", "OIHW", "NCHW"),
        precision=jax.lax.Precision.HIGHEST,
    )
    assert out.shape == (N, C, H, W)
    assert jnp.allclose(out, ref, atol=1e-5, rtol=1e-5)

    print("KERNEL_OK")
</pallas_src>

<mosaic_0001>
module attributes {stable_mosaic.version = 11 : i64} {
  func.func @_gauss_kernel(%arg0: i32, %arg1: memref<8x256xf32, #tpu.memory_space<vmem>>, %arg2: memref<1x256xi32, #tpu.memory_space<vmem>>, %arg3: memref<8x256xf32, #tpu.memory_space<vmem>>) attributes {dimension_semantics = [#tpu.dimension_semantics<parallel>], iteration_bounds = array<i64: 1>, scalar_prefetch = 0 : i64, scratch_operands = 0 : i64, tpu.core_type = #tpu.core_type<tc>, window_params = [{transform_indices = @transform_0, window_bounds = array<i64: 8, 256>}, {pipeline_mode = #tpu.pipeline_mode<synchronous>, transform_indices = @transform_1, window_bounds = array<i64: 1, 256>}, {transform_indices = @transform_2, window_bounds = array<i64: 8, 256>}]} {
    %c0 = arith.constant 0 : index
    %c0_0 = arith.constant 0 : index
    %0 = vector.load %arg1[%c0, %c0_0] : memref<8x256xf32, #tpu.memory_space<vmem>>, vector<8x256xf32>
    %c0_1 = arith.constant 0 : index
    %c0_2 = arith.constant 0 : index
    %1 = vector.load %arg2[%c0_1, %c0_2] : memref<1x256xi32, #tpu.memory_space<vmem>>, vector<1x256xi32>
    %cst = arith.constant 0.451862752 : f32
    %2 = vector.broadcast %cst : f32 to vector<8x256xf32>
    %3 = arith.mulf %2, %0 : vector<8x256xf32>
    %cst_3 = arith.constant 0.000000e+00 : f32
    %4 = vector.broadcast %cst_3 : f32 to vector<8x16xf32>
    %5 = vector.extract_strided_slice %0 {offsets = [0, 0], sizes = [8, 240], strides = [1, 1]} : vector<8x256xf32> to vector<8x240xf32>
    %6 = tpu.concatenate %4, %5 in 1 : vector<8x16xf32>, vector<8x240xf32> -> vector<8x256xf32>
    %cst_4 = arith.constant 0.274068624 : f32
    %7 = vector.broadcast %cst_4 : f32 to vector<8x256xf32>
    %8 = arith.mulf %7, %6 : vector<8x256xf32>
    %9 = arith.addf %3, %8 : vector<8x256xf32>
    %cst_5 = arith.constant 0.000000e+00 : f32
    %10 = vector.broadcast %cst_5 : f32 to vector<8x16xf32>
    %11 = vector.extract_strided_slice %0 {offsets = [0, 16], sizes = [8, 240], strides = [1, 1]} : vector<8x256xf32> to vector<8x240xf32>
    %12 = tpu.concatenate %11, %10 in 1 : vector<8x240xf32>, vector<8x16xf32> -> vector<8x256xf32>
    %cst_6 = arith.constant 0.274068624 : f32
    %13 = vector.broadcast %cst_6 : f32 to vector<8x256xf32>
    %14 = arith.mulf %13, %12 : vector<8x256xf32>
    %15 = arith.addf %9, %14 : vector<8x256xf32>
    %cst_7 = arith.constant 0.451862752 : f32
    %16 = vector.broadcast %cst_7 : f32 to vector<8x256xf32>
    %17 = arith.mulf %16, %15 : vector<8x256xf32>
    %cst_8 = arith.constant 0.000000e+00 : f32
    %18 = vector.broadcast %cst_8 : f32 to vector<8x1xf32>
    %19 = vector.extract_strided_slice %15 {offsets = [0, 0], sizes = [8, 255], strides = [1, 1]} : vector<8x256xf32> to vector<8x255xf32>
    %20 = tpu.concatenate %18, %19 in 1 : vector<8x1xf32>, vector<8x255xf32> -> vector<8x256xf32>
    %c1_i32 = arith.constant 1 : i32
    %21 = vector.broadcast %c1_i32 : i32 to vector<1x256xi32>
    %22 = arith.cmpi sge, %1, %21 : vector<1x256xi32>
    %cst_9 = arith.constant 0.000000e+00 : f32
    %23 = vector.shape_cast %22 : vector<1x256xi1> to vector<1x256xi1>
    %24 = vector.broadcast %23 : vector<1x256xi1> to vector<8x256xi1>
    %25 = vector.broadcast %cst_9 : f32 to vector<8x256xf32>
    %26 = arith.select %24, %20, %25 : vector<8x256xi1>, vector<8x256xf32>
    %cst_10 = arith.constant 0.274068624 : f32
    %27 = vector.broadcast %cst_10 : f32 to vector<8x256xf32>
    %28 = arith.mulf %27, %26 : vector<8x256xf32>
    %29 = arith.addf %17, %28 : vector<8x256xf32>
    %cst_11 = arith.constant 0.000000e+00 : f32
    %30 = vector.broadcast %cst_11 : f32 to vector<8x1xf32>
    %31 = vector.extract_strided_slice %15 {offsets = [0, 1], sizes = [8, 255], strides = [1, 1]} : vector<8x256xf32> to vector<8x255xf32>
    %32 = tpu.concatenate %31, %30 in 1 : vector<8x255xf32>, vector<8x1xf32> -> vector<8x256xf32>
    %c15_i32 = arith.constant 15 : i32
    %33 = vector.broadcast %c15_i32 : i32 to vector<1x256xi32>
    %34 = arith.cmpi slt, %1, %33 : vector<1x256xi32>
    %cst_12 = arith.constant 0.000000e+00 : f32
    %35 = vector.shape_cast %34 : vector<1x256xi1> to vector<1x256xi1>
    %36 = vector.broadcast %35 : vector<1x256xi1> to vector<8x256xi1>
    %37 = vector.broadcast %cst_12 : f32 to vector<8x256xf32>
    %38 = arith.select %36, %32, %37 : vector<8x256xi1>, vector<8x256xf32>
    %cst_13 = arith.constant 0.274068624 : f32
    %39 = vector.broadcast %cst_13 : f32 to vector<8x256xf32>
    %40 = arith.mulf %39, %38 : vector<8x256xf32>
    %41 = arith.addf %29, %40 : vector<8x256xf32>
    %c0_14 = arith.constant 0 : index
    %c0_15 = arith.constant 0 : index
    %42 = vector.load %arg3[%c0_14, %c0_15] : memref<8x256xf32, #tpu.memory_space<vmem>>, vector<8x256xf32>
    tpu.vector_store %arg3[%c0_14, %c0_15], %41 {strides = array<i32>} : memref<8x256xf32, #tpu.memory_space<vmem>>, vector<8x256xf32>,
    return
  }
  func.func @transform_0(%arg0: i32) -> (i32, i32) {
    %c0_i32 = arith.constant 0 : i32
    %c0_i32_0 = arith.constant 0 : i32
    return %arg0, %c0_i32 : i32, i32
  }
  func.func @transform_1(%arg0: i32) -> (i32, i32) {
    %c0_i32 = arith.constant 0 : i32
    %c0_i32_0 = arith.constant 0 : i32
    %c0_i32_1 = arith.constant 0 : i32
    return %c0_i32, %c0_i32_0 : i32, i32
  }
  func.func @transform_2(%arg0: i32) -> (i32, i32) {
    %c0_i32 = arith.constant 0 : i32
    %c0_i32_0 = arith.constant 0 : i32
    return %arg0, %c0_i32 : i32, i32
  }
}

</mosaic_0001>

<llo_original>
// kernel: tpu_custom_call.1
$region0: #{tpu_custom_call.1}
  #allocation0 [shape = 'u32[]', space=smem, size = 0x4, offset = 0x4, fixed_abs, tag = 'smem constant byte address 0x4 - core index']
  #allocation1 [shape = 'u32[144,128]{1,0:T(1,128)}', space=vmem, size = 0x12000, scoped, tag = 'internal scratch']
  %s0 = inlined_call_operand.hbm [shape: f32[8,256], index: 0, kind: input, shape index: {}]
  %s1 = inlined_call_operand.vmem [shape: s32[1,256], index: 1, kind: input, shape index: {}]
  %s2 = inlined_call_operand.hbm [shape: f32[8,256], index: 2, kind: output, shape index: {}]
  %s3 = sld [smem:[#allocation0]]
  $region22: #{tpu_custom_call.1} parent=0
    _
  %s5 = ssub.s32 1, %s3
  %s6 = scalar_select 0, %s5, %s3
  $region1: #{tpu_custom_call.1} parent=0
    #allocation2 [shape = 'u8[8192]{0}', space=vmem, size = 0x2000, scoped, tag = 'input window, operand 0, single buffered']
    #allocation3 [shape = 's32[1]{0}', space=sflag, size = 0x4, scoped, tag = 'scoped memory for tpu_custom_call.1']
    #allocation4 [shape = 's32[1]{0}', space=sflag, size = 0x4, scoped, tag = 'scoped memory for tpu_custom_call.1']
    #allocation5 [shape = 'u8[8192]{0}', space=vmem, size = 0x2000, scoped, tag = 'output window, operand 0, single buffered']
    %7 = vsyncpa [#allocation3], 0
    %8 = vsyncpa [#allocation4], 0
    // Predicated region
    $region2: #{tpu_custom_call.1} parent=1 // pred_check
      _
    $region3: #{tpu_custom_call.1} parent=1 // pred_check_branch
      %10 = sbr.rel (0) target = $region5
    $region4: #{tpu_custom_call.1} parent=1 // pred_region
      %s12 = ssub.s32 256, 256
      %13 = vsyncadd [#allocation3], %s12
      %s15 = sshll.u32 [#allocation2], 4
      %s16 = int_to_ptr.vmem [resolvable:$true] %s15
      %18 = dma.hbm_to_vmem [thread:$0]  %s0, 256, %s16, [#allocation3]
    $region5: #{tpu_custom_call.1} parent=1 // pred_fallthru
      _
    // Predicated region
    $region6: #{tpu_custom_call.1} parent=1 // pred_check
      _
    $region7: #{tpu_custom_call.1} parent=1 // pred_check_branch
      %20 = sbr.rel (0) target = $region9
    $region8: #{tpu_custom_call.1} parent=1 // pred_region
      _
    $region9: #{tpu_custom_call.1} parent=1 // pred_fallthru
      _
    // Predicated region
    $region10: #{tpu_custom_call.1} parent=1 // pred_check
      _
    $region11: #{tpu_custom_call.1} parent=1 // pred_check_branch
      %22 = sbr.rel (0) target = $region13
    $region12: #{tpu_custom_call.1} parent=1 // pred_region
      %23 = dma.done [#allocation3], 256
    $region13: #{tpu_custom_call.1} parent=1 // pred_fallthru
      _
    %v24 = vld [vmem:[#allocation2] sm:$0xff]
    %v25 = vld [vmem:[#allocation2 + $0x8] sm:$0xff]
    %v26 = vld [vmem:[%s1] sm:$0x3]
    %v27 = vmul.f32 %v24, 0.45186275
    %v28 = vmul.f32 %v25, 0.45186275
    %31 = vrot.lane.b32.xlu0 %v24, 16
    %v32 = vpop.permute.xlu0 %31
    %33 = vrot.lane.b32.xlu0 %v25, 16
    %v34 = vpop.permute.xlu0 %33
    %vm35 = vcmask 130048
    %v36 = vsel %vm35, %v32, %v34
    %v39 = vsel %vm35, 0.0, %v32
    %v40 = vmul.f32 %v39, 0.27406862
    %v41 = vmul.f32 %v36, 0.27406862
    %v42 = vadd.f32 %v27, %v40
    %v43 = vadd.f32 %v28, %v41
    %44 = vrot.lane.b32.xlu0 %v24, 112
    %v45 = vpop.permute.xlu0 %44
    %46 = vrot.lane.b32.xlu0 %v25, 112
    %v47 = vpop.permute.xlu0 %46
    %vm48 = vcmask 916480
    %v49 = vsel %vm48, %v45, %v47
    %v52 = vsel %vm48, %v47, 0.0
    %v53 = vmul.f32 %v49, 0.27406862
    %v54 = vmul.f32 %v52, 0.27406862
    %v55 = vadd.f32 %v42, %v53
    %v56 = vadd.f32 %v43, %v54
    %v57 = vmul.f32 %v55, 0.45186275
    %v58 = vmul.f32 %v56, 0.45186275
    %61 = vrot.lane.b32.xlu0 %v55, 1
    %v62 = vpop.permute.xlu0 %61
    %63 = vrot.lane.b32.xlu0 %v56, 1
    %v64 = vpop.permute.xlu0 %63
    %vm65 = vcmask 7168
    %v66 = vsel %vm65, %v62, %v64
    %v69 = vsel %vm65, 0.0, %v62
    %vm70 = vcmp.ge.s32.totalorder %v26, 1
    %v71 = vsel %vm70, 1, 0
    %v72 = vlaneseq
    %v73 = vshrl.u32 %v72, 7
    %v74 = vsub.s32 0, %v73
    %v75 = vrot.slane %v71, %v74
    %v76 = vlaneseq
    %v77 = vshrl.u32 %v76, 7
    %v78 = vsub.s32 1, %v77
    %v79 = vrot.slane %v71, %v78
    %vm80 = vcmp.eq.s32.totalorder %v75, 1
    %vm81 = vcmp.eq.s32.totalorder %v79, 1
    %v82 = vsel %vm80, %v69, 0.0
    %v83 = vsel %vm81, %v66, 0.0
    %v84 = vmul.f32 %v82, 0.27406862
    %v85 = vmul.f32 %v83, 0.27406862
    %v86 = vadd.f32 %v57, %v84
    %v87 = vadd.f32 %v58, %v85
    %88 = vrot.lane.b32.xlu0 %v55, 127
    %v89 = vpop.permute.xlu0 %88
    %90 = vrot.lane.b32.xlu0 %v56, 127
    %v91 = vpop.permute.xlu0 %90
    %vm92 = vcmask 1039360
    %v93 = vsel %vm92, %v89, %v91
    %v96 = vsel %vm92, %v91, 0.0
    %vm97 = vcmp.lt.s32.totalorder %v26, 15
    %v98 = vsel %vm97, 1, 0
    %v99 = vlaneseq
    %v100 = vshrl.u32 %v99, 7
    %v101 = vsub.s32 0, %v100
    %v102 = vrot.slane %v98, %v101
    %v103 = vlaneseq
    %v104 = vshrl.u32 %v103, 7
    %v105 = vsub.s32 1, %v104
    %v106 = vrot.slane %v98, %v105
    %vm107 = vcmp.eq.s32.totalorder %v102, 1
    %vm108 = vcmp.eq.s32.totalorder %v106, 1
    %v109 = vsel %vm107, %v93, 0.0
    %v110 = vsel %vm108, %v96, 0.0
    %v111 = vmul.f32 %v109, 0.27406862
    %v112 = vmul.f32 %v110, 0.27406862
    %v113 = vadd.f32 %v86, %v111
    %v114 = vadd.f32 %v87, %v112
    %115 = vst [vmem:[#allocation5] sm:$0xff] %v113
    %116 = vst [vmem:[#allocation5 + $0x8] sm:$0xff] %v114
    // Predicated region
    $region14: #{tpu_custom_call.1} parent=1 // pred_check
      _
    $region15: #{tpu_custom_call.1} parent=1 // pred_check_branch
      %118 = sbr.rel (0) target = $region17
    $region16: #{tpu_custom_call.1} parent=1 // pred_region
      %s120 = ssub.s32 256, 256
      %121 = vsyncadd [#allocation4], %s120
      %s123 = sshll.u32 [#allocation5], 4
      %s124 = int_to_ptr.vmem [resolvable:$true] %s123
      %126 = dma.vmem_to_hbm [thread:$0]  %s124, 256, %s2, [#allocation4]
    $region17: #{tpu_custom_call.1} parent=1 // pred_fallthru
      _
    // Predicated region
    $region18: #{tpu_custom_call.1} parent=1 // pred_check
      _
    $region19: #{tpu_custom_call.1} parent=1 // pred_check_branch
      %128 = sbr.rel (0) target = $region21
    $region20: #{tpu_custom_call.1} parent=1 // pred_region
      %129 = dma.done [#allocation4], 256
    $region21: #{tpu_custom_call.1} parent=1 // pred_fallthru
      _
    %130 = vsyncpa [#allocation3], 1
    %131 = vsyncpa [#allocation4], 1

</llo_original>
